<compile_context>
chip_gen: v7x
topology: tpu7x:2x2x1
jax: 0.10.0
libtpu: 0.0.40
codegen_flags: <defaults>
</compile_context>

<pallas_src>
import jax
import jax.numpy as jnp
from jax.experimental import pallas as pl
from jax.experimental.pallas import tpu as pltpu


def _spiking_upsample_kernel(x_ref, w_ref, thr_ref, o_ref):
    # ConvTranspose3d(k=s=2) hot path: one MXU matmul over channels, voxels in
    # lanes (lane-dense, 128-aligned output tile -> full-width unmasked vst).
    #   acc[k_row, voxel] = sum_ci w'[k_row, ci] * x[ci, voxel], k_row=(co,kd,kh,kw)
    acc = jnp.dot(w_ref[...], x_ref[...], preferred_element_type=jnp.float32)
    # conv-bias + BN(eval) shift + single-step LIF (tau=2, v_reset=0, v_th=1,
    # v0=0, decay_input=True => v = y/2) folded into a per-row threshold:
    #   spike = ((acc + b) / 2 >= 1)  <=>  acc >= 2 - b == thr
    # Dropout(p=0.1) in eval mode is the identity.
    o_ref[...] = jnp.where(acc >= thr_ref[...], 1.0, 0.0).astype(o_ref.dtype)


def _fold_params(weight, bias, gamma, beta, run_mean, run_var, eps):
    """Fold BN(eval) scale into the conv weight and bias/BN-shift/LIF-threshold
    into one per-row constant. Rows ordered (co, kd, kh, kw)."""
    Cin, Cout = weight.shape[0], weight.shape[1]
    K = 8 * Cout
    a = gamma / jnp.sqrt(run_var + eps)                        # (Cout,)
    b = a * (bias - run_mean) + beta                           # (Cout,)
    # PyTorch ConvTranspose3d weight (Cin, Cout, 2, 2, 2) -> (K, Cin), pre-scaled.
    wm = jnp.transpose(weight * a[None, :, None, None, None],
                       (1, 2, 3, 4, 0)).reshape(K, Cin)
    thr = jnp.repeat(2.0 - b, 8).reshape(K, 1).astype(jnp.float32)
    return wm, thr


def _choose_tile(M, tm_req, n_batch):
    """Largest legal lane tile: a multiple of 128 (or the full M when M < 128)."""
    if M <= 128:
        return M
    tm = max(128, (min(tm_req, M) // 128) * 128)
    # v7x shares the 'parallel' grid axes across 2 TensorCores: keep >= 2 programs.
    if n_batch * pl.cdiv(M, tm) < 2 and tm >= 256:
        tm = max(128, ((tm // 2) // 128) * 128)
    return tm


def spiking_upsample3d_grouped(x, weight, bias, gamma, beta, run_mean, run_var,
                               eps=1e-5, tm=8192, out_dtype=jnp.int8):
    """Fused upsample. Returns spikes in the kernel-native grouped layout
        (N, 8*Cout, D, H, W), rows ordered (co, kd, kh, kw):
        grouped[n, ((co*2+kd)*2+kh)*2+kw, d, h, w]
            == out_ncdhw[n, co, 2d+kd, 2h+kh, 2w+kw]
    Preferred consumer layout: no post-kernel scatter, no padded/garbage tail.
    """
    N, Cin, D, H, W = x.shape
    Cout = weight.shape[1]
    K = 8 * Cout
    M = D * H * W

    wm, thr = _fold_params(weight, bias, gamma, beta, run_mean, run_var, eps)
    # bf16 halves input HBM bytes; in a real model this cast fuses into the
    # producing layer's epilogue. Accumulation stays f32 on the MXU.
    wm = wm.astype(jnp.bfloat16)
    xm = x.reshape(N, Cin, M).astype(jnp.bfloat16)   # reshape is free (row-major)

    tm = _choose_tile(M, tm, N)

    out_mat = pl.pallas_call(
        _spiking_upsample_kernel,
        out_shape=jax.ShapeDtypeStruct((N, K, M), out_dtype),
        grid_spec=pltpu.PrefetchScalarGridSpec(
            num_scalar_prefetch=0,
            grid=(N, pl.cdiv(M, tm)),          # partial trailing tile is masked
            in_specs=[
                pl.BlockSpec((None, Cin, tm), lambda n, i: (n, 0, i)),
                pl.BlockSpec((K, Cin), lambda n, i: (0, 0)),
                pl.BlockSpec((K, 1), lambda n, i: (0, 0)),
            ],
            out_specs=pl.BlockSpec((None, K, tm), lambda n, i: (n, 0, i)),
        ),
        compiler_params=pltpu.CompilerParams(
            dimension_semantics=("parallel", "parallel")),
    )(xm, wm, thr)
    return out_mat.reshape(N, K, D, H, W)


def spiking_upsample3d(x, weight, bias, gamma, beta, run_mean, run_var,
                       eps=1e-5, tm=8192, out_dtype=jnp.int8):
    """Module-parity entry point: spikes in NCDHW (N, Cout, 2D, 2H, 2W).
    Spike values are exactly 0/1 in `out_dtype` (int8 by default to minimize
    HBM traffic). Prefer `spiking_upsample3d_grouped` to skip the final
    depth-to-space interleave entirely."""
    N, Cin, D, H, W = x.shape
    Cout = weight.shape[1]
    g = spiking_upsample3d_grouped(x, weight, bias, gamma, beta, run_mean,
                                   run_var, eps=eps, tm=tm, out_dtype=out_dtype)
    # TODO(synk): fuse this scatter into the kernel (grid over depth planes,
    # kd/kh via block indexing + in-kernel kw<->w lane interleave) once the
    # relayout lowering is validated; until then it is one XLA pass on int8.
    out = g.reshape(N, Cout, 2, 2, 2, D, H, W)
    out = jnp.transpose(out, (0, 1, 5, 2, 6, 3, 7, 4))
    return out.reshape(N, Cout, 2 * D, 2 * H, 2 * W)


def _reference(x, weight, bias, gamma, beta, run_mean, run_var, eps=1e-5):
    """Pure-JAX reference: stride-2 transposed conv + BN(eval) + 1-step LIF."""
    N, Cin, D, H, W = x.shape
    Cout = weight.shape[1]
    # out[n, co, 2d+kd, 2h+kh, 2w+kw] = sum_ci x[n,ci,d,h,w] * W[ci,co,kd,kh,kw]
    y = jnp.einsum("ncdhw,cokpq->nodkhpwq", x, weight)
    y = y.reshape(N, Cout, 2 * D, 2 * H, 2 * W) + bias[None, :, None, None, None]
    a = gamma / jnp.sqrt(run_var + eps)
    y = a[None, :, None, None, None] * (y - run_mean[None, :, None, None, None]) \
        + beta[None, :, None, None, None]
    v = 0.5 * y
    return (v >= 1.0).astype(jnp.float32), v


# TODO(synk): training-mode BatchNorm/Dropout and multi-timestep LIF membrane
# state are not implemented (eval-mode, single-step forward semantics only).

if __name__ == "__main__":
    key = jax.random.PRNGKey(0)
    k_x, k_w, k_b, k_g, k_bt, k_m, k_v = jax.random.split(key, 7)

    N, Cin, Cout = 2, 8, 4
    D = H = W = 8   # output spatial = 16

    x = jax.random.normal(k_x, (N, Cin, D, H, W), dtype=jnp.float32) * 2.0
    weight = jax.random.normal(k_w, (Cin, Cout, 2, 2, 2), dtype=jnp.float32) * 0.5
    bias = jax.random.normal(k_b, (Cout,), dtype=jnp.float32) * 0.1
    gamma = 1.0 + 0.1 * jax.random.normal(k_g, (Cout,), dtype=jnp.float32)
    beta = 0.1 * jax.random.normal(k_bt, (Cout,), dtype=jnp.float32)
    run_mean = 0.1 * jax.random.normal(k_m, (Cout,), dtype=jnp.float32)
    run_var = 1.0 + 0.1 * jnp.abs(jax.random.normal(k_v, (Cout,), dtype=jnp.float32))

    fwd = jax.jit(spiking_upsample3d)
    out = jax.block_until_ready(fwd(x, weight, bias, gamma, beta, run_mean, run_var))
    assert out.shape == (N, Cout, 2 * D, 2 * H, 2 * W), out.shape
    assert out.dtype == jnp.int8, out.dtype

    ref_spk, ref_v = _reference(x, weight, bias, gamma, beta, run_mean, run_var)
    out_f32 = out.astype(jnp.float32)

    # Spikes are a hard threshold; bf16 inputs + MXU accumulation order can only
    # flip voxels whose reference membrane value is within the rounding bound of
    # the decision boundary (v ~= 1).  Per-voxel bound: 0.5*|a|*(|x|*|W|) * 2^-6.
    a = gamma / jnp.sqrt(run_var + 1e-5)
    abs_y = jnp.einsum("ncdhw,cokpq->nodkhpwq", jnp.abs(x), jnp.abs(weight))
    abs_y = abs_y.reshape(N, Cout, 2 * D, 2 * H, 2 * W)
    bound = 0.5 * jnp.abs(a)[None, :, None, None, None] * abs_y * (2.0 ** -6) + 1e-3
    mismatch = out_f32 != ref_spk
    ok = jnp.all(jnp.logical_or(~mismatch, jnp.abs(ref_v - 1.0) <= bound))
    assert bool(ok), "mismatch vs reference away from the threshold boundary"
    print("KERNEL_OK")
</pallas_src>

<mosaic_0001>
module attributes {stable_mosaic.version = 11 : i64} {
  func.func @_spiking_upsample_kernel(%arg0: i32, %arg1: i32, %arg2: memref<1x8x512xbf16, #tpu.memory_space<vmem>>, %arg3: memref<32x8xbf16, #tpu.memory_space<vmem>>, %arg4: memref<32x1xf32, #tpu.memory_space<vmem>>, %arg5: memref<1x32x512xi8, #tpu.memory_space<vmem>>) attributes {dimension_semantics = [#tpu.dimension_semantics<parallel>, #tpu.dimension_semantics<parallel>], iteration_bounds = array<i64: 2, 1>, scalar_prefetch = 0 : i64, scratch_operands = 0 : i64, tpu.core_type = #tpu.core_type<tc>, window_params = [{transform_indices = @transform_0, window_bounds = array<i64: 1, 8, 512>}, {pipeline_mode = #tpu.pipeline_mode<synchronous>, transform_indices = @transform_1, window_bounds = array<i64: 32, 8>}, {pipeline_mode = #tpu.pipeline_mode<synchronous>, transform_indices = @transform_2, window_bounds = array<i64: 32, 1>}, {transform_indices = @transform_3, window_bounds = array<i64: 1, 32, 512>}]} {
    %c0 = arith.constant 0 : index
    %c0_0 = arith.constant 0 : index
    %0 = vector.load %arg3[%c0, %c0_0] : memref<32x8xbf16, #tpu.memory_space<vmem>>, vector<32x8xbf16>
    %c0_1 = arith.constant 0 : index
    %c0_2 = arith.constant 0 : index
    %c0_3 = arith.constant 0 : index
    %1 = vector.load %arg2[%c0_1, %c0_2, %c0_3] : memref<1x8x512xbf16, #tpu.memory_space<vmem>>, vector<1x8x512xbf16>
    %2 = vector.shape_cast %1 : vector<1x8x512xbf16> to vector<8x512xbf16>
    %cst = arith.constant dense<0.000000e+00> : vector<32x512xf32>
    %3 = tpu.matmul %0, %2, %cst {dimension_numbers = #tpu.dot_dimension_numbers<[1], [0], [0], [1], [0, 0, 1, 1], [], []>} : vector<32x8xbf16>, vector<8x512xbf16>, vector<32x512xf32> -> vector<32x512xf32>
    %c0_4 = arith.constant 0 : index
    %c0_5 = arith.constant 0 : index
    %4 = vector.load %arg4[%c0_4, %c0_5] : memref<32x1xf32, #tpu.memory_space<vmem>>, vector<32x1xf32>
    %5 = vector.broadcast %4 : vector<32x1xf32> to vector<32x512xf32>
    %6 = arith.cmpf oge, %3, %5 : vector<32x512xf32>
    %cst_6 = arith.constant 1.000000e+00 : f32
    %cst_7 = arith.constant 0.000000e+00 : f32
    %7 = vector.broadcast %cst_6 : f32 to vector<32x512xf32>
    %8 = vector.broadcast %cst_7 : f32 to vector<32x512xf32>
    %9 = arith.select %6, %7, %8 : vector<32x512xi1>, vector<32x512xf32>
    %10 = arith.fptosi %9 : vector<32x512xf32> to vector<32x512xi8>
    %c0_8 = arith.constant 0 : index
    %c0_9 = arith.constant 0 : index
    %c0_10 = arith.constant 0 : index
    %11 = vector.load %arg5[%c0_8, %c0_9, %c0_10] : memref<1x32x512xi8, #tpu.memory_space<vmem>>, vector<1x32x512xi8>
    %12 = vector.shape_cast %11 : vector<1x32x512xi8> to vector<32x512xi8>
    %13 = vector.shape_cast %10 : vector<32x512xi8> to vector<1x32x512xi8>
    tpu.vector_store %arg5[%c0_8, %c0_9, %c0_10], %13 {strides = array<i32>} : memref<1x32x512xi8, #tpu.memory_space<vmem>>, vector<1x32x512xi8>,
    return
  }
  func.func @transform_0(%arg0: i32, %arg1: i32) -> (i32, i32, i32) {
    %c0_i32 = arith.constant 0 : i32
    %c0_i32_0 = arith.constant 0 : i32
    return %arg0, %c0_i32, %arg1 : i32, i32, i32
  }
  func.func @transform_1(%arg0: i32, %arg1: i32) -> (i32, i32) {
    %c0_i32 = arith.constant 0 : i32
    %c0_i32_0 = arith.constant 0 : i32
    %c0_i32_1 = arith.constant 0 : i32
    return %c0_i32, %c0_i32_0 : i32, i32
  }
  func.func @transform_2(%arg0: i32, %arg1: i32) -> (i32, i32) {
    %c0_i32 = arith.constant 0 : i32
    %c0_i32_0 = arith.constant 0 : i32
    %c0_i32_1 = arith.constant 0 : i32
    return %c0_i32, %c0_i32_0 : i32, i32
  }
  func.func @transform_3(%arg0: i32, %arg1: i32) -> (i32, i32, i32) {
    %c0_i32 = arith.constant 0 : i32
    %c0_i32_0 = arith.constant 0 : i32
    return %arg0, %c0_i32, %arg1 : i32, i32, i32
  }
}

</mosaic_0001>

<llo_original>
// kernel: spiking_upsample3d.1
$region0: #{spiking_upsample3d.1}
  #allocation0 [shape = 'u32[]', space=smem, size = 0x4, offset = 0x4, fixed_abs, tag = 'smem constant byte address 0x4 - core index']
  #allocation1 [shape = 'u32[144,128]{1,0:T(1,128)}', space=vmem, size = 0x12000, scoped, tag = 'internal scratch']
  %s0 = inlined_call_operand.vmem [shape: bf16[2,8,512], index: 0, kind: input, shape index: {}]
  %s1 = inlined_call_operand.vmem [shape: bf16[32,8], index: 1, kind: input, shape index: {}]
  %s2 = inlined_call_operand.vmem [shape: f32[32,1], index: 2, kind: input, shape index: {}]
  %s3 = inlined_call_operand.vmem [shape: s8[2,32,512], index: 3, kind: output, shape index: {}]
  %s4 = sld [smem:[#allocation0]]
  $region45: #{spiking_upsample3d.1} parent=0
    _
  %s6 = ssub.s32 1, %s4
  %s7 = scalar_select 0, %s6, %s4
  loop: start=0, step=1, limit=4
  $region2: #{spiking_upsample3d.1} parent=0 // loop_pre_header
    _
  $region3: #{spiking_upsample3d.1} parent=0 // loop_header
    %s9 = sphi 0, %s13
    %p10 = scmp.ge.s32.totalorder %s9, 4
    %s16 = sphi 0, %s28
    %s17 = sphi 0, %s24
    %s18 = sphi 0, %s16
    %s19 = sphi 0, %s17
    %s20 = sphi 0, %s18
    %s21 = sphi 0, %s19
    %s33 = sphi 0, %s35
    %s36 = sphi 0, %s33
    %s37 = sphi 0, %s36
    %s53 = sphi 0, %s37
    %s57 = sphi 0, %s57
    %s59 = sphi 0, %s57
    %s60 = sphi 0, %s59
    %s74 = sphi 0, %s60
    %s78 = sphi 0, %s78
    %s80 = sphi 0, %s78
    %s81 = sphi 0, %s80
    %s95 = sphi 0, %s81
    %s103 = sphi 0, %s105
    %s106 = sphi 0, %s103
    %s107 = sphi 0, %s106
    %s123 = sphi 0, %s107
  $region4: #{spiking_upsample3d.1} parent=0 // loop_header_branch
    %12 = sbr.rel (%p10) target = $region8
  $region5: #{spiking_upsample3d.1} parent=0 // loop_body
    %s14 = ssub.s32 %s9, 1
    %s15 = ssub.s32 %s9, 2
    %s22 = sadd.s32 1, %s17
    %p23 = scmp.ge.s32.totalorder %s22, 1
    %s24 = scalar_select %p23, 0, %s22
    %s25 = sadd.s32 1, %s16
    %s26 = scalar_select %p23, %s25, %s16
    %p27 = scmp.ge.s32.totalorder %s26, 2
    %s28 = scalar_select %p27, 0, %s26
    %s29 = ssub.s32 %s16, %s28
    %s30 = ssub.s32 %s17, %s24
    %s31 = sor.u32 %s29, %s30
    %p32 = scmp.eq.s32.totalorder %s31, 0
    %s34 = sadd.s32 %s33, 1
    %s35 = scalar_select %p32, %s33, %s34
    %p38 = pneg %p32
    %p39 = scmp.eq.s32.totalorder %s9, 1
    %p40 = por %p38, %p39
    %p41 = scmp.ne.s32.totalorder %s33, %s36
    %p42 = scmp.eq.s32.totalorder %s9, 0
    %p43 = por %p41, %p42
    %p44 = scmp.ne.s32.totalorder %s33, %s36
    %p45 = scmp.eq.s32.totalorder %s14, 1
    %p46 = por %p44, %p45
    %p47 = scmp.ne.s32.totalorder %s36, %s37
    %p48 = scmp.eq.s32.totalorder %s14, 0
    %p49 = por %p47, %p48
    %p50 = scmp.ne.s32.totalorder %s36, %s37
    %p51 = scmp.eq.s32.totalorder %s15, 1
    %p52 = por %p50, %p51
    %p54 = scmp.ne.s32.totalorder %s37, %s53
    %p55 = scmp.eq.s32.totalorder %s15, 0
    %p56 = por %p54, %p55
    %s58 = sadd.s32 %s57, 1
    %p61 = scmp.eq.s32.totalorder %s9, 1
    %p62 = scmp.ne.s32.totalorder %s57, %s59
    %p63 = scmp.eq.s32.totalorder %s9, 0
    %p64 = por %p62, %p63
    %p65 = scmp.ne.s32.totalorder %s57, %s59
    %p66 = scmp.eq.s32.totalorder %s14, 1
    %p67 = por %p65, %p66
    %p68 = scmp.ne.s32.totalorder %s59, %s60
    %p69 = scmp.eq.s32.totalorder %s14, 0
    %p70 = por %p68, %p69
    %p71 = scmp.ne.s32.totalorder %s59, %s60
    %p72 = scmp.eq.s32.totalorder %s15, 1
    %p73 = por %p71, %p72
    %p75 = scmp.ne.s32.totalorder %s60, %s74
    %p76 = scmp.eq.s32.totalorder %s15, 0
    %p77 = por %p75, %p76
    %s79 = sadd.s32 %s78, 1
    %p82 = scmp.eq.s32.totalorder %s9, 1
    %p83 = scmp.ne.s32.totalorder %s78, %s80
    %p84 = scmp.eq.s32.totalorder %s9, 0
    %p85 = por %p83, %p84
    %p86 = scmp.ne.s32.totalorder %s78, %s80
    %p87 = scmp.eq.s32.totalorder %s14, 1
    %p88 = por %p86, %p87
    %p89 = scmp.ne.s32.totalorder %s80, %s81
    %p90 = scmp.eq.s32.totalorder %s14, 0
    %p91 = por %p89, %p90
    %p92 = scmp.ne.s32.totalorder %s80, %s81
    %p93 = scmp.eq.s32.totalorder %s15, 1
    %p94 = por %p92, %p93
    %p96 = scmp.ne.s32.totalorder %s81, %s95
    %p97 = scmp.eq.s32.totalorder %s15, 0
    %p98 = por %p96, %p97
    %s99 = ssub.s32 %s16, %s28
    %s100 = ssub.s32 %s17, %s24
    %s101 = sor.u32 %s99, %s100
    %p102 = scmp.eq.s32.totalorder %s101, 0
    %s104 = sadd.s32 %s103, 1
    %s105 = scalar_select %p102, %s103, %s104
    %p108 = pneg %p102
    %p109 = scmp.eq.s32.totalorder %s9, 1
    %p110 = por %p108, %p109
    %p111 = scmp.ne.s32.totalorder %s103, %s106
    %p112 = scmp.eq.s32.totalorder %s9, 0
    %p113 = por %p111, %p112
    %p114 = scmp.ne.s32.totalorder %s103, %s106
    %p115 = scmp.eq.s32.totalorder %s14, 1
    %p116 = por %p114, %p115
    %p117 = scmp.ne.s32.totalorder %s106, %s107
    %p118 = scmp.eq.s32.totalorder %s14, 0
    %p119 = por %p117, %p118
    %p120 = scmp.ne.s32.totalorder %s106, %s107
    %p121 = scmp.eq.s32.totalorder %s15, 1
    %p122 = por %p120, %p121
    %p124 = scmp.ne.s32.totalorder %s107, %s123
    %p125 = scmp.eq.s32.totalorder %s15, 0
    %p126 = por %p124, %p125
    %p127 = scmp.le.s32.totalorder 1, %s9
    %p128 = scmp.lt.s32.totalorder %s9, 3
    %p129 = pnand %p127, %p128
    %p130 = pneg %p129
    // Predicated region
    $region9: #{spiking_upsample3d.1} parent=5 // pred_check
      _
    $region10: #{spiking_upsample3d.1} parent=5 // pred_check_branch
      %132 = sbr.rel (%p129) target = $region12
    $region11: #{spiking_upsample3d.1} parent=5 // pred_region
      %s133 = ssub.s32 %s9, 1
      // Predicated region
      $region13: #{spiking_upsample3d.1} parent=11 // pred_check
        %p134 = pneg %p70
      $region14: #{spiking_upsample3d.1} parent=11 // pred_check_branch
        %136 = sbr.rel (%p134) target = $region16
      $region15: #{spiking_upsample3d.1} parent=11 // pred_region
        _
      $region16: #{spiking_upsample3d.1} parent=11 // pred_fallthru
        _
      // Predicated region
      $region17: #{spiking_upsample3d.1} parent=11 // pred_check
        %p137 = pneg %p91
      $region18: #{spiking_upsample3d.1} parent=11 // pred_check_branch
        %139 = sbr.rel (%p137) target = $region20
      $region19: #{spiking_upsample3d.1} parent=11 // pred_region
        _
      $region20: #{spiking_upsample3d.1} parent=11 // pred_fallthru
        _
    $region12: #{spiking_upsample3d.1} parent=5 // pred_fallthru
      _
    %p140 = scmp.lt.s32.totalorder %s9, 2
    // Predicated region
    $region21: #{spiking_upsample3d.1} parent=5 // pred_check
      %p141 = pneg %p140
    $region22: #{spiking_upsample3d.1} parent=5 // pred_check_branch
      %143 = sbr.rel (%p141) target = $region24
    $region23: #{spiking_upsample3d.1} parent=5 // pred_region
      // Predicated region
      $region25: #{spiking_upsample3d.1} parent=23 // pred_check
        %p144 = pneg %p43
      $region26: #{spiking_upsample3d.1} parent=23 // pred_check_branch
        %146 = sbr.rel (%p144) target = $region28
      $region27: #{spiking_upsample3d.1} parent=23 // pred_region
        %s147 = smul.u32 4, %s17
        %p148 = scmp.lt.s32.totalorder %s16, 1
        %s149 = scalar_select %p148, %s16, 1
        %p150 = scmp.lt.s32.totalorder %s147, 3
        %s151 = scalar_select %p150, %s147, 3
        %s152 = smul.addr %s149, 4
        %s153 = sadd.s32 %s151, %s152
        %s154 = smul.addr %s153, 4
        %s155 = scalar_lea.vmem %s0, %s154
        %s156 = smul.u32 4, %s17
      $region28: #{spiking_upsample3d.1} parent=23 // pred_fallthru
        _
    $region24: #{spiking_upsample3d.1} parent=5 // pred_fallthru
      _
    %p157 = scmp.le.s32.totalorder 1, %s9
    %p158 = scmp.lt.s32.totalorder %s9, 3
    %p159 = pnand %p157, %p158
    %p160 = pneg %p159
    // Predicated region
    $region29: #{spiking_upsample3d.1} parent=5 // pred_check
      _
    $region30: #{spiking_upsample3d.1} parent=5 // pred_check_branch
      %162 = sbr.rel (%p159) target = $region32
    $region31: #{spiking_upsample3d.1} parent=5 // pred_region
      %s163 = ssub.s32 %s9, 1
      %s164 = smul.u32 4, %s19
      %p165 = scmp.lt.s32.totalorder %s18, 1
      %s166 = scalar_select %p165, %s18, 1
      %p167 = scmp.lt.s32.totalorder %s164, 3
      %s168 = scalar_select %p167, %s164, 3
      %s169 = smul.addr %s166, 4
      %s170 = sadd.s32 %s168, %s169
      %s171 = smul.addr %s170, 4
      %s172 = scalar_lea.vmem %s0, %s171
      %p173 = pneg %p49
      %p174 = pneg %p46
      %p175 = pneg %p70
      %p176 = pneg %p67
      %p177 = pneg %p91
      %p178 = pneg %p88
      %p179 = pneg %p119
      %p180 = pneg %p116
      %s181 = smul.u32 4, %s19
      %p182 = scmp.lt.s32.totalorder %s18, 1
      %s183 = scalar_select %p182, %s18, 1
      %p184 = scmp.lt.s32.totalorder %s181, 3
      %s185 = scalar_select %p184, %s181, 3
      %s186 = smul.addr %s183, 16
      %s187 = sadd.s32 %s185, %s186
      %s188 = smul.addr %s187, 2
      %s189 = scalar_lea.vmem %s3, %s188
      %s190 = smul.u32 4, %s19
      %p191 = scmp.lt.s32.totalorder %s18, 1
      %s192 = scalar_select %p191, %s18, 1
      %p193 = scmp.lt.s32.totalorder %s190, 3
      %s194 = scalar_select %p193, %s190, 3
      %s195 = smul.addr %s192, 4
      %s196 = sadd.s32 %s194, %s195
      %s197 = smul.addr %s196, 4
      %s198 = scalar_lea.vmem %s0, %s197
      %s199 = smul.u32 4, %s19
      %s200 = smul.u32 4, %s19
      %p201 = scmp.lt.s32.totalorder %s18, 1
      %s202 = scalar_select %p201, %s18, 1
      %p203 = scmp.lt.s32.totalorder %s200, 3
      %s204 = scalar_select %p203, %s200, 3
      %s205 = smul.addr %s202, 16
      %s206 = sadd.s32 %s204, %s205
      %s207 = smul.addr %s206, 2
      %s208 = scalar_lea.vmem %s3, %s207
      %s209 = smul.u32 4, %s19
      %v211 = vld [vmem:[%s1] sm:$0xf]
      %v212 = vld [vmem:[%s1 + $0x4] sm:$0xf]
      %v213 = vld [vmem:[%s1 + $0x8] sm:$0xf]
      %v214 = vld [vmem:[%s1 + $0xc] sm:$0xf]
      %v215 = vld [vmem:[%s198] sm:$0xff]
      %v216 = vld [vmem:[%s198 + $0x8] sm:$0xff]
      %v221 = vunpack.c.l.b16 %v211
      %v222 = vunpack.c.l.b16 %v212
      %v223 = vunpack.c.l.b16 %v213
      %v224 = vunpack.c.l.b16 %v214
      %v225 = vpack.c.b16 %v222, %v221
      %v226 = vpack.c.b16 %v224, %v223
      %v229 = vunpack.c.l.b16 %v215
      %v230 = vunpack.c.h.b16 %v215
      %v231 = vunpack.c.l.b16 %v216
      %v232 = vunpack.c.h.b16 %v216
      %v233 = vpack.c.b16 %v229, %v229
      %v234 = vpack.c.b16 %v230, %v230
      %v235 = vpack.c.b16 %v231, %v231
      %v236 = vpack.c.b16 %v232, %v232
      %vm237 = vcmask 64512
      %v239 = vsel %vm237, %v225, 0
      %v242 = vsel %vm237, %v226, 0
      %vm244 = vcmask 1043456
      %v246 = vsel %vm244, %v233, 0
      %v249 = vsel %vm244, %v234, 0
      %v252 = vsel %vm244, %v235, 0
      %v255 = vsel %vm244, %v236, 0
      %257 = vmatprep.subr.bf16.mxu0 %v249
      %258 = vmatpush1.bf16.msra.mxu0 %v246
      %259 = vmatprep.subr.bf16.mxu0 0
      %260 = vmatpush1.bf16.msra.mxu0 0
      %261 = vmatprep.subr.bf16.mxu0 0
      %262 = vmatpush1.bf16.msra.mxu0 0
      %263 = vmatprep.subr.bf16.mxu0 0
      %264 = vmatpush1.bf16.msra.mxu0 0
      %265 = vmatprep.subr.bf16.mxu0 0
      %266 = vmatpush1.bf16.msra.mxu0 0
      %267 = vmatprep.subr.bf16.mxu0 0
      %268 = vmatpush1.bf16.msra.mxu0 0
      %269 = vmatprep.subr.bf16.mxu0 0
      %270 = vmatpush1.bf16.msra.mxu0 0
      %271 = vmatprep.subr.bf16.mxu0 0
      %272 = vmatpush1.bf16.msra.mxu0 0
      %273 = vmatprep.subr.bf16.mxu0 0
      %274 = vmatpush1.bf16.msra.mxu0 0
      %275 = vmatprep.subr.bf16.mxu0 0
      %276 = vmatpush1.bf16.msra.mxu0 0
      %277 = vmatprep.subr.bf16.mxu0 0
      %278 = vmatpush1.bf16.msra.mxu0 0
      %279 = vmatprep.subr.bf16.mxu0 0
      %280 = vmatpush1.bf16.msra.mxu0 0
      %281 = vmatprep.subr.bf16.mxu0 0
      %282 = vmatpush1.bf16.msra.mxu0 0
      %283 = vmatprep.subr.bf16.mxu0 0
      %284 = vmatpush1.bf16.msra.mxu0 0
      %285 = vmatprep.subr.bf16.mxu0 0
      %286 = vmatpush1.bf16.msra.mxu0 0
      %287 = vmatprep.subr.bf16.mxu0 0
      %288 = vmatpush1.bf16.msra.mxu0 0
      %289 = vmatprep.mubr.bf16.mxu0 0
      %290 = vmatmul.mubr.bf16.gmra.mrb[0].mxu0 %v239
      %v291 = vpop.f32.mrb[0].mxu0
      %v292 = vadd.f32 0.0, %v291
      %v293 = vpop.f32.mrb[0].mxu0
      %v294 = vadd.f32 0.0, %v293
      %v295 = vpop.f32.mrb[0].mxu0
      %v296 = vadd.f32 0.0, %v295
      %v297 = vpop.f32.mrb[0].mxu0
      %v298 = vadd.f32 0.0, %v297
      %299 = vmatprep.mubr.bf16.mxu0 0
      %300 = vmatmul.mubr.bf16.gmra.mrb[0].mxu0 %v242
      %v301 = vpop.f32.mrb[0].mxu0
      %v302 = vadd.f32 0.0, %v301
      %v303 = vpop.f32.mrb[0].mxu0
      %v304 = vadd.f32 0.0, %v303
      %v305 = vpop.f32.mrb[0].mxu0
      %v306 = vadd.f32 0.0, %v305
      %v307 = vpop.f32.mrb[0].mxu0
      %v308 = vadd.f32 0.0, %v307
      %309 = vdwg.mxu0
      %310 = vmatprep.subr.bf16.mxu0 %v255
      %311 = vmatpush1.bf16.msra.mxu0 %v252
      %312 = vmatprep.subr.bf16.mxu0 0
      %313 = vmatpush1.bf16.msra.mxu0 0
      %314 = vmatprep.subr.bf16.mxu0 0
      %315 = vmatpush1.bf16.msra.mxu0 0
      %316 = vmatprep.subr.bf16.mxu0 0
      %317 = vmatpush1.bf16.msra.mxu0 0
      %318 = vmatprep.subr.bf16.mxu0 0
      %319 = vmatpush1.bf16.msra.mxu0 0
      %320 = vmatprep.subr.bf16.mxu0 0
      %321 = vmatpush1.bf16.msra.mxu0 0
      %322 = vmatprep.subr.bf16.mxu0 0
      %323 = vmatpush1.bf16.msra.mxu0 0
      %324 = vmatprep.subr.bf16.mxu0 0
      %325 = vmatpush1.bf16.msra.mxu0 0
      %326 = vmatprep.subr.bf16.mxu0 0
      %327 = vmatpush1.bf16.msra.mxu0 0
      %328 = vmatprep.subr.bf16.mxu0 0
      %329 = vmatpush1.bf16.msra.mxu0 0
      %330 = vmatprep.subr.bf16.mxu0 0
      %331 = vmatpush1.bf16.msra.mxu0 0
      %332 = vmatprep.subr.bf16.mxu0 0
      %333 = vmatpush1.bf16.msra.mxu0 0
      %334 = vmatprep.subr.bf16.mxu0 0
      %335 = vmatpush1.bf16.msra.mxu0 0
      %336 = vmatprep.subr.bf16.mxu0 0
      %337 = vmatpush1.bf16.msra.mxu0 0
      %338 = vmatprep.subr.bf16.mxu0 0
      %339 = vmatpush1.bf16.msra.mxu0 0
      %340 = vmatprep.subr.bf16.mxu0 0
      %341 = vmatpush1.bf16.msra.mxu0 0
      %342 = vmatprep.mubr.bf16.mxu0 0
      %343 = vmatmul.mubr.bf16.gmra.mrb[0].mxu0 %v239
      %v344 = vpop.f32.mrb[0].mxu0
      %v345 = vadd.f32 0.0, %v344
      %v346 = vpop.f32.mrb[0].mxu0
      %v347 = vadd.f32 0.0, %v346
      %v348 = vpop.f32.mrb[0].mxu0
      %v349 = vadd.f32 0.0, %v348
      %v350 = vpop.f32.mrb[0].mxu0
      %v351 = vadd.f32 0.0, %v350
      %352 = vmatprep.mubr.bf16.mxu0 0
      %353 = vmatmul.mubr.bf16.gmra.mrb[0].mxu0 %v242
      %v354 = vpop.f32.mrb[0].mxu0
      %v355 = vadd.f32 0.0, %v354
      %v356 = vpop.f32.mrb[0].mxu0
      %v357 = vadd.f32 0.0, %v356
      %v358 = vpop.f32.mrb[0].mxu0
      %v359 = vadd.f32 0.0, %v358
      %v360 = vpop.f32.mrb[0].mxu0
      %v361 = vadd.f32 0.0, %v360
      %362 = vdwg.mxu0
      %v363 = vld [vmem:[%s2] sm:$0xff]
      %v364 = vld [vmem:[%s2 + $0x8] sm:$0xff]
      %v365 = vld [vmem:[%s2 + $0x10] sm:$0xff]
      %v366 = vld [vmem:[%s2 + $0x18] sm:$0xff]
      %368 = vset.pattern.permute.xlu0 0
      %369 = vperm.xlu0 %368, %v363
      %v370 = vpop.permute.xlu0 %369
      %373 = vset.pattern.permute.xlu0 0
      %374 = vperm.xlu0 %373, %v364
      %v375 = vpop.permute.xlu0 %374
      %378 = vset.pattern.permute.xlu0 0
      %379 = vperm.xlu0 %378, %v365
      %v380 = vpop.permute.xlu0 %379
      %383 = vset.pattern.permute.xlu0 0
      %384 = vperm.xlu0 %383, %v366
      %v385 = vpop.permute.xlu0 %384
      %vm387 = vcmp.ge.f32.partialorder %v292, %v370
      %vm388 = vcmp.ge.f32.partialorder %v294, %v370
      %vm389 = vcmp.ge.f32.partialorder %v345, %v370
      %vm390 = vcmp.ge.f32.partialorder %v347, %v370
      %vm391 = vcmp.ge.f32.partialorder %v296, %v375
      %vm392 = vcmp.ge.f32.partialorder %v298, %v375
      %vm393 = vcmp.ge.f32.partialorder %v349, %v375
      %vm394 = vcmp.ge.f32.partialorder %v351, %v375
      %vm395 = vcmp.ge.f32.partialorder %v302, %v380
      %vm396 = vcmp.ge.f32.partialorder %v304, %v380
      %vm397 = vcmp.ge.f32.partialorder %v355, %v380
      %vm398 = vcmp.ge.f32.partialorder %v357, %v380
      %vm399 = vcmp.ge.f32.partialorder %v306, %v385
      %vm400 = vcmp.ge.f32.partialorder %v308, %v385
      %vm401 = vcmp.ge.f32.partialorder %v359, %v385
      %vm402 = vcmp.ge.f32.partialorder %v361, %v385
      %v403 = vsel %vm387, 1.0, 0.0
      %v404 = vsel %vm388, 1.0, 0.0
      %v405 = vsel %vm389, 1.0, 0.0
      %v406 = vsel %vm390, 1.0, 0.0
      %v407 = vsel %vm391, 1.0, 0.0
      %v408 = vsel %vm392, 1.0, 0.0
      %v409 = vsel %vm393, 1.0, 0.0
      %v410 = vsel %vm394, 1.0, 0.0
      %v411 = vsel %vm395, 1.0, 0.0
      %v412 = vsel %vm396, 1.0, 0.0
      %v413 = vsel %vm397, 1.0, 0.0
      %v414 = vsel %vm398, 1.0, 0.0
      %v415 = vsel %vm399, 1.0, 0.0
      %v416 = vsel %vm400, 1.0, 0.0
      %v417 = vsel %vm401, 1.0, 0.0
      %v418 = vsel %vm402, 1.0, 0.0
      %v419 = vtrunc.f32 %v403
      %v420 = vtrunc.f32 %v404
      %v421 = vtrunc.f32 %v405
      %v422 = vtrunc.f32 %v406
      %v423 = vtrunc.f32 %v407
      %v424 = vtrunc.f32 %v408
      %v425 = vtrunc.f32 %v409
      %v426 = vtrunc.f32 %v410
      %v427 = vtrunc.f32 %v411
      %v428 = vtrunc.f32 %v412
      %v429 = vtrunc.f32 %v413
      %v430 = vtrunc.f32 %v414
      %v431 = vtrunc.f32 %v415
      %v432 = vtrunc.f32 %v416
      %v433 = vtrunc.f32 %v417
      %v434 = vtrunc.f32 %v418
      %v435 = vpack.c.f32.eXmY %v419, %v423, 312
      %v439 = vpack.c.f32.eXmY %v427, %v431, 312
      %v443 = vpack.c.b8 %v439, %v435
      %v445 = vpack.c.f32.eXmY %v420, %v424, 312
      %v449 = vpack.c.f32.eXmY %v428, %v432, 312
      %v453 = vpack.c.b8 %v449, %v445
      %v455 = vpack.c.f32.eXmY %v421, %v425, 312
      %v459 = vpack.c.f32.eXmY %v429, %v433, 312
      %v463 = vpack.c.b8 %v459, %v455
      %v465 = vpack.c.f32.eXmY %v422, %v426, 312
      %v469 = vpack.c.f32.eXmY %v430, %v434, 312
      %v473 = vpack.c.b8 %v469, %v465
      %v475 = vunpack.c.0.s8 %v443
      %v476 = vunpack.c.0.s8 %v453
      %v477 = vunpack.c.0.s8 %v463
      %v478 = vunpack.c.0.s8 %v473
      %v479 = vunpack.c.1.s8 %v443
      %v480 = vunpack.c.1.s8 %v453
      %v481 = vunpack.c.1.s8 %v463
      %v482 = vunpack.c.1.s8 %v473
      %v483 = vunpack.c.2.s8 %v443
      %v484 = vunpack.c.2.s8 %v453
      %v485 = vunpack.c.2.s8 %v463
      %v486 = vunpack.c.2.s8 %v473
      %v487 = vunpack.c.3.s8 %v443
      %v488 = vunpack.c.3.s8 %v453
      %v489 = vunpack.c.3.s8 %v463
      %v490 = vunpack.c.3.s8 %v473
      %v491 = vpack.c.b16 %v476, %v475
      %v492 = vpack.c.b16 %v478, %v477
      %v493 = vpack.c.b8 %v492, %v491
      %v494 = vpack.c.b16 %v480, %v479
      %v495 = vpack.c.b16 %v482, %v481
      %v496 = vpack.c.b8 %v495, %v494
      %v497 = vpack.c.b16 %v484, %v483
      %v498 = vpack.c.b16 %v486, %v485
      %v499 = vpack.c.b8 %v498, %v497
      %v500 = vpack.c.b16 %v488, %v487
      %v501 = vpack.c.b16 %v490, %v489
      %v502 = vpack.c.b8 %v501, %v500
      %503 = vst [vmem:[%s208] sm:$0xff] %v493
      %504 = vst [vmem:[%s208 + $0x8] sm:$0xff] %v496
      %505 = vst [vmem:[%s208 + $0x10] sm:$0xff] %v499
      %506 = vst [vmem:[%s208 + $0x18] sm:$0xff] %v502
      %s507 = smul.u32 4, %s19
      %p508 = scmp.lt.s32.totalorder %s18, 1
      %s509 = scalar_select %p508, %s18, 1
      %p510 = scmp.lt.s32.totalorder %s507, 3
      %s511 = scalar_select %p510, %s507, 3
      %s512 = smul.addr %s509, 16
      %s513 = sadd.s32 %s511, %s512
      %s514 = smul.addr %s513, 2
      %s515 = scalar_lea.vmem %s3, %s514
      // Predicated region
      $region33: #{spiking_upsample3d.1} parent=31 // pred_check
        %p516 = pneg %p116
      $region34: #{spiking_upsample3d.1} parent=31 // pred_check_branch
        %518 = sbr.rel (%p516) target = $region36
      $region35: #{spiking_upsample3d.1} parent=31 // pred_region
        %s519 = smul.u32 4, %s19
      $region36: #{spiking_upsample3d.1} parent=31 // pred_fallthru
        _
    $region32: #{spiking_upsample3d.1} parent=5 // pred_fallthru
      _
    %p520 = scmp.le.s32.totalorder 2, %s9
    // Predicated region
    $region37: #{spiking_upsample3d.1} parent=5 // pred_check
      %p521 = pneg %p520
    $region38: #{spiking_upsample3d.1} parent=5 // pred_check_branch
      %523 = sbr.rel (%p521) target = $region40
    $region39: #{spiking_upsample3d.1} parent=5 // pred_region
      %s524 = ssub.s32 %s9, 2
      // Predicated region
      $region41: #{spiking_upsample3d.1} parent=39 // pred_check
        %p525 = pneg %p122
      $region42: #{spiking_upsample3d.1} parent=39 // pred_check_branch
        %527 = sbr.rel (%p525) target = $region44
      $region43: #{spiking_upsample3d.1} parent=39 // pred_region
        %s528 = smul.u32 4, %s21
        %p529 = scmp.lt.s32.totalorder %s20, 1
        %s530 = scalar_select %p529, %s20, 1
        %p531 = scmp.lt.s32.totalorder %s528, 3
        %s532 = scalar_select %p531, %s528, 3
        %s533 = smul.addr %s530, 16
        %s534 = sadd.s32 %s532, %s533
        %s535 = smul.addr %s534, 2
        %s536 = scalar_lea.vmem %s3, %s535
      $region44: #{spiking_upsample3d.1} parent=39 // pred_fallthru
        _
    $region40: #{spiking_upsample3d.1} parent=5 // pred_fallthru
      _
  $region6: #{spiking_upsample3d.1} parent=0 // loop_footer
    %s13 = sadd.s32 1, %s9
  $region7: #{spiking_upsample3d.1} parent=0 // loop_footer_branch
    %8 = sbr.rel target = $region3
  $region8: #{spiking_upsample3d.1} parent=0 // loop_exit
    _

</llo_original>
